<compile_context>
chip_gen: v5e
topology: v5e:2x2
jax: 0.10.0
libtpu: 0.0.40
codegen_flags: <defaults>
</compile_context>

<pallas_src>
import functools

import jax
import jax.numpy as jnp
from jax import lax
from jax.experimental import pallas as pl
from jax.experimental.pallas import tpu as pltpu

NUM_MODELS = 3
NUM_CLASSES = 10


def _round_up(x, m):
    return ((x + m - 1) // m) * m


def _vote_and_store(logits, out_ref, num_models, num_classes):
    """logits: (TB, NP) f32 fused member-class slab.  Writes (TB, 128) i32 votes."""
    tb, np_ = logits.shape
    lane = lax.broadcasted_iota(jnp.int32, (tb, np_), 1)      # fused class-slab lane id

    vote_counts = jnp.zeros((tb, np_), jnp.int32)
    # Static unroll over the few ensemble members; all work stays on the full
    # padded 128-lane vreg layout (sentinel/mask tricks, no sub-128 slices).
    for m in range(num_models):
        lo = m * num_classes
        member_mask = (lane >= lo) & (lane < lo + num_classes)
        masked = jnp.where(member_mask, logits, -jnp.inf)
        mx = jnp.max(masked, axis=1, keepdims=True)            # (TB, 1)
        # argmax with first-occurrence tie-break (torch.argmax semantics).
        cand = jnp.where(member_mask & (logits == mx), lane - lo, np_)
        pred = jnp.min(cand, axis=1, keepdims=True)            # (TB, 1) class id
        vote_counts = vote_counts + (lane == pred).astype(jnp.int32)

    # mode over members: highest vote count, smallest class id wins ties
    # (matches torch.mode returning the smallest modal value).
    max_cnt = jnp.max(vote_counts, axis=1, keepdims=True)
    mode_cand = jnp.where((vote_counts == max_cnt) & (lane < num_classes), lane, np_)
    vote = jnp.min(mode_cand, axis=1, keepdims=True)            # (TB, 1) i32

    # Lane-dense store: broadcast across 128 lanes so the epilogue issues full
    # (unmasked) vector stores; wrapper reads column 0.
    out_ref[...] = jnp.broadcast_to(vote, out_ref.shape).astype(jnp.int32)


def _ensemble_kernel_fused(x_ref, w_ref, b_ref, out_ref, *,
                           num_models, num_classes, compute_dtype):
    """Single-K-step path (K reduction collapsed).  x_ref: (TB, F_PAD) f32,
    w_ref: (F_PAD, NP) bf16 VMEM-resident slab, b_ref: (1, NP) f32,
    out_ref: (TB, 128) i32.  Grid = (batch tiles,)."""
    xt = x_ref[...].astype(compute_dtype)                       # in-kernel cast (free under DMA)
    logits = jnp.dot(xt, w_ref[...], preferred_element_type=jnp.float32) + b_ref[...]
    _vote_and_store(logits, out_ref, num_models, num_classes)


def _ensemble_kernel_ktiled(x_ref, w_ref, b_ref, out_ref, acc_ref, *,
                            num_models, num_classes, compute_dtype, tk, resident_w):
    """Multi-K-step path for large F.  Grid = (batch tiles, K tiles); K last.
    If resident_w, w_ref holds the full (F_PAD, NP) slab (fetched once) and we
    slice the current K window in VMEM; otherwise w_ref is a (TK, NP) tile."""
    k = pl.program_id(1)

    @pl.when(k == 0)
    def _init():
        acc_ref[...] = jnp.zeros_like(acc_ref)

    xt = x_ref[...].astype(compute_dtype)
    if resident_w:
        w_tile = w_ref[pl.ds(pl.multiple_of(k * tk, 128), tk), :]
    else:
        w_tile = w_ref[...]
    acc_ref[...] += jnp.dot(xt, w_tile, preferred_element_type=jnp.float32)

    @pl.when(k == pl.num_programs(1) - 1)
    def _epilogue():
        _vote_and_store(acc_ref[...] + b_ref[...], out_ref, num_models, num_classes)


def hard_voting_ensemble(x, weights, biases, *, compute_dtype=jnp.bfloat16):
    """x: (B, C, H, W) NCHW.  weights: (M, F, NUM_CLASSES).  biases: (M, 1, NUM_CLASSES).
    Returns (B,) int32 majority-vote class ids."""
    B = x.shape[0]
    M, F, C = weights.shape

    x_flat = x.reshape(B, -1).astype(jnp.float32)   # stays f32 in HBM; cast in-kernel
    assert x_flat.shape[1] == F, (x_flat.shape, F)

    n_pad = max(128, _round_up(M * C, 128))          # fused lane-dense output dim

    # --- K tiling: collapse the reduction entirely for small/medium F ---
    if _round_up(F, 128) <= 4096:
        tk = _round_up(F, 128)
    else:
        tk = 2048
    f_pad = _round_up(F, tk)
    nk = f_pad // tk

    # --- batch tiling: >= 2 tiles when B allows (v7x megacore), capped at 256
    #     rows so the one-shot vote epilogue stays spill-free ---
    if B <= 8:
        tb = B                                        # block == full dim, no pad needed
        b_pad = B
    else:
        tb = min(256, _round_up(-(-B // 2), 8))
        b_pad = _round_up(B, tb)
    nb = b_pad // tb

    # --- pad x only when actually required (no wrapper-side cast/materialize pass) ---
    if (b_pad, f_pad) != (B, F):
        x_p = jnp.zeros((b_pad, f_pad), jnp.float32).at[:B, :F].set(x_flat)
    else:
        x_p = x_flat

    # --- wrapper-side layout plumbing: fuse members, zero-pad, cast weights to bf16 ---
    w_slab = jnp.transpose(weights, (1, 0, 2)).reshape(F, M * C)     # (F, M*C)
    w_p = jnp.zeros((f_pad, n_pad), compute_dtype).at[:F, :M * C].set(
        w_slab.astype(compute_dtype))
    b_p = jnp.zeros((1, n_pad), jnp.float32).at[:, :M * C].set(
        biases.reshape(1, M * C).astype(jnp.float32))

    # --- VMEM budgeting (v7x: 64 MiB physical; v5e/v6e: 128 MiB; scoped default lower) ---
    try:
        vmem_cap = int(pltpu.get_tpu_info().vmem_capacity_bytes)
    except Exception:
        vmem_cap = 64 * 1024 * 1024                   # conservative (v7x) fallback
    vmem_budget = int(vmem_cap * 0.7)

    itemsize_w = jnp.dtype(compute_dtype).itemsize
    slab_bytes = f_pad * n_pad * itemsize_w
    x_tile_bytes = tb * tk * 4
    misc_bytes = tb * n_pad * 4 + 2 * tb * 128 * 4 + 2 * n_pad * 4 + (1 << 20)
    # Account possible double-buffering of the slab (2x) even with a constant index map.
    resident_w = (2 * slab_bytes + 2 * x_tile_bytes + misc_bytes) <= vmem_budget

    w_hbm_bytes = slab_bytes if resident_w else nb * slab_bytes
    cost = pl.CostEstimate(
        flops=2 * b_pad * f_pad * n_pad,
        transcendentals=0,
        bytes_accessed=int(b_pad * f_pad * 4 + w_hbm_bytes + n_pad * 4 + b_pad * 128 * 4),
    )

    if nk == 1:
        kernel = functools.partial(_ensemble_kernel_fused,
                                   num_models=M, num_classes=C,
                                   compute_dtype=compute_dtype)
        grid = (nb,)
        in_specs = [
            pl.BlockSpec((tb, f_pad), lambda i: (i, 0)),            # x tile (f32)
            pl.BlockSpec((f_pad, n_pad), lambda i: (0, 0)),         # slab, fetched once
            pl.BlockSpec((1, n_pad), lambda i: (0, 0)),             # fused bias
        ]
        out_specs = pl.BlockSpec((tb, 128), lambda i: (i, 0))
        scratch_shapes = []
        sems = ("parallel",)
    else:
        kernel = functools.partial(_ensemble_kernel_ktiled,
                                   num_models=M, num_classes=C,
                                   compute_dtype=compute_dtype,
                                   tk=tk, resident_w=resident_w)
        grid = (nb, nk)
        if resident_w:
            w_spec = pl.BlockSpec((f_pad, n_pad), lambda i, k: (0, 0))   # fetched once
        else:
            w_spec = pl.BlockSpec((tk, n_pad), lambda i, k: (k, 0))      # K-tiled fallback
        in_specs = [
            pl.BlockSpec((tb, tk), lambda i, k: (i, k)),
            w_spec,
            pl.BlockSpec((1, n_pad), lambda i, k: (0, 0)),
        ]
        out_specs = pl.BlockSpec((tb, 128), lambda i, k: (i, 0))
        scratch_shapes = [pltpu.VMEM((tb, n_pad), jnp.float32)]
        sems = ("parallel", "arbitrary")

    out = pl.pallas_call(
        kernel,
        out_shape=jax.ShapeDtypeStruct((b_pad, 128), jnp.int32),
        grid_spec=pltpu.PrefetchScalarGridSpec(
            num_scalar_prefetch=0,
            grid=grid,
            in_specs=in_specs,
            out_specs=out_specs,
            scratch_shapes=scratch_shapes,
        ),
        compiler_params=pltpu.CompilerParams(
            dimension_semantics=sems,
            vmem_limit_bytes=vmem_budget,
        ),
        cost_estimate=cost,
    )(x_p, w_p, b_p)

    return out[:B, 0]                                  # (B,)


def _reference(x, weights, biases, compute_dtype=jnp.bfloat16):
    """Pure-JAX reference mirroring the PyTorch semantics (bf16 matmul inputs, f32 acc)."""
    B = x.shape[0]
    M, F, C = weights.shape
    xf = x.reshape(B, -1).astype(compute_dtype)
    logits = jnp.einsum("bf,mfc->mbc", xf, weights.astype(compute_dtype),
                        preferred_element_type=jnp.float32)
    logits = logits + biases.astype(jnp.float32)                  # (M, B, C)
    preds = jnp.argmax(logits, axis=-1)                           # (M, B)
    counts = (preds[:, :, None] == jnp.arange(C)[None, None, :]).sum(0)   # (B, C)
    return jnp.argmax(counts, axis=-1).astype(jnp.int32)          # (B,)


if __name__ == "__main__":
    key = jax.random.PRNGKey(0)
    kx, kw, kb = jax.random.split(key, 3)

    B, C, H, W = 2, 4, 16, 16
    F = C * H * W

    x = jax.random.normal(kx, (B, C, H, W), dtype=jnp.float32)
    weights = 0.02 * jax.random.normal(kw, (NUM_MODELS, F, NUM_CLASSES), dtype=jnp.float32)
    biases = 0.1 * jax.random.normal(kb, (NUM_MODELS, 1, NUM_CLASSES), dtype=jnp.float32)

    votes = jax.block_until_ready(hard_voting_ensemble(x, weights, biases))
    ref = jax.block_until_ready(_reference(x, weights, biases))

    assert votes.shape == (B,), votes.shape
    assert votes.dtype == jnp.int32, votes.dtype
    assert bool(jnp.all(votes == ref)), (votes, ref)

    print("KERNEL_OK")
</pallas_src>

<mosaic_0001>
module attributes {stable_mosaic.version = 11 : i64} {
  func.func @_ensemble_kernel_fused(%arg0: i32, %arg1: memref<2x1024xf32, #tpu.memory_space<vmem>>, %arg2: memref<1024x128xbf16, #tpu.memory_space<vmem>>, %arg3: memref<1x128xf32, #tpu.memory_space<vmem>>, %arg4: memref<2x128xi32, #tpu.memory_space<vmem>>) attributes {dimension_semantics = [#tpu.dimension_semantics<parallel>], iteration_bounds = array<i64: 1>, scalar_prefetch = 0 : i64, scratch_operands = 0 : i64, tpu.core_type = #tpu.core_type<tc>, window_params = [{transform_indices = @transform_0, window_bounds = array<i64: 2, 1024>}, {pipeline_mode = #tpu.pipeline_mode<synchronous>, transform_indices = @transform_1, window_bounds = array<i64: 1024, 128>}, {pipeline_mode = #tpu.pipeline_mode<synchronous>, transform_indices = @transform_2, window_bounds = array<i64: 1, 128>}, {transform_indices = @transform_3, window_bounds = array<i64: 2, 128>}]} {
    %c0 = arith.constant 0 : index
    %c0_0 = arith.constant 0 : index
    %0 = vector.load %arg1[%c0, %c0_0] : memref<2x1024xf32, #tpu.memory_space<vmem>>, vector<2x1024xf32>
    %1 = arith.truncf %0 : vector<2x1024xf32> to vector<2x1024xbf16>
    %c0_1 = arith.constant 0 : index
    %c0_2 = arith.constant 0 : index
    %2 = vector.load %arg2[%c0_1, %c0_2] : memref<1024x128xbf16, #tpu.memory_space<vmem>>, vector<1024x128xbf16>
    %cst = arith.constant dense<0.000000e+00> : vector<2x128xf32>
    %3 = tpu.matmul %1, %2, %cst {dimension_numbers = #tpu.dot_dimension_numbers<[1], [0], [0], [1], [0, 0, 1, 1], [], []>} : vector<2x1024xbf16>, vector<1024x128xbf16>, vector<2x128xf32> -> vector<2x128xf32>
    %c0_3 = arith.constant 0 : index
    %c0_4 = arith.constant 0 : index
    %4 = vector.load %arg3[%c0_3, %c0_4] : memref<1x128xf32, #tpu.memory_space<vmem>>, vector<1x128xf32>
    %5 = vector.broadcast %4 : vector<1x128xf32> to vector<2x128xf32>
    %6 = arith.addf %3, %5 : vector<2x128xf32>
    %7 = tpu.iota {dimensions = array<i32: 1>} : vector<2x128xi32>
    %c0_i32 = arith.constant 0 : i32
    %8 = vector.broadcast %c0_i32 : i32 to vector<2x128xi32>
    %c0_i32_5 = arith.constant 0 : i32
    %9 = vector.broadcast %c0_i32_5 : i32 to vector<2x128xi32>
    %10 = arith.cmpi sge, %7, %9 : vector<2x128xi32>
    %c10_i32 = arith.constant 10 : i32
    %11 = vector.broadcast %c10_i32 : i32 to vector<2x128xi32>
    %12 = arith.cmpi slt, %7, %11 : vector<2x128xi32>
    %13 = arith.andi %10, %12 : vector<2x128xi1>
    %cst_6 = arith.constant 0xFF800000 : f32
    %14 = vector.broadcast %cst_6 : f32 to vector<2x128xf32>
    %15 = arith.select %13, %6, %14 : vector<2x128xi1>, vector<2x128xf32>
    %cst_7 = arith.constant dense<0xFF800000> : vector<2xf32>
    %16 = vector.multi_reduction <maximumf>, %15, %cst_7 [1] : vector<2x128xf32> to vector<2xf32>
    %17 = vector.shape_cast %16 : vector<2xf32> to vector<2x1xf32>
    %18 = vector.broadcast %17 : vector<2x1xf32> to vector<2x128xf32>
    %19 = arith.cmpf oeq, %6, %18 : vector<2x128xf32>
    %20 = arith.andi %13, %19 : vector<2x128xi1>
    %c0_i32_8 = arith.constant 0 : i32
    %21 = vector.broadcast %c0_i32_8 : i32 to vector<2x128xi32>
    %22 = arith.subi %7, %21 : vector<2x128xi32>
    %c128_i32 = arith.constant 128 : i32
    %23 = vector.broadcast %c128_i32 : i32 to vector<2x128xi32>
    %24 = arith.select %20, %22, %23 : vector<2x128xi1>, vector<2x128xi32>
    %cst_9 = arith.constant dense<2147483647> : vector<2xi32>
    %25 = vector.multi_reduction <minsi>, %24, %cst_9 [1] : vector<2x128xi32> to vector<2xi32>
    %26 = vector.shape_cast %25 : vector<2xi32> to vector<2x1xi32>
    %27 = vector.broadcast %26 : vector<2x1xi32> to vector<2x128xi32>
    %28 = arith.cmpi eq, %7, %27 : vector<2x128xi32>
    %29 = arith.extui %28 : vector<2x128xi1> to vector<2x128xi32>
    %30 = arith.addi %8, %29 : vector<2x128xi32>
    %c10_i32_10 = arith.constant 10 : i32
    %31 = vector.broadcast %c10_i32_10 : i32 to vector<2x128xi32>
    %32 = arith.cmpi sge, %7, %31 : vector<2x128xi32>
    %c20_i32 = arith.constant 20 : i32
    %33 = vector.broadcast %c20_i32 : i32 to vector<2x128xi32>
    %34 = arith.cmpi slt, %7, %33 : vector<2x128xi32>
    %35 = arith.andi %32, %34 : vector<2x128xi1>
    %cst_11 = arith.constant 0xFF800000 : f32
    %36 = vector.broadcast %cst_11 : f32 to vector<2x128xf32>
    %37 = arith.select %35, %6, %36 : vector<2x128xi1>, vector<2x128xf32>
    %cst_12 = arith.constant dense<0xFF800000> : vector<2xf32>
    %38 = vector.multi_reduction <maximumf>, %37, %cst_12 [1] : vector<2x128xf32> to vector<2xf32>
    %39 = vector.shape_cast %38 : vector<2xf32> to vector<2x1xf32>
    %40 = vector.broadcast %39 : vector<2x1xf32> to vector<2x128xf32>
    %41 = arith.cmpf oeq, %6, %40 : vector<2x128xf32>
    %42 = arith.andi %35, %41 : vector<2x128xi1>
    %c10_i32_13 = arith.constant 10 : i32
    %43 = vector.broadcast %c10_i32_13 : i32 to vector<2x128xi32>
    %44 = arith.subi %7, %43 : vector<2x128xi32>
    %c128_i32_14 = arith.constant 128 : i32
    %45 = vector.broadcast %c128_i32_14 : i32 to vector<2x128xi32>
    %46 = arith.select %42, %44, %45 : vector<2x128xi1>, vector<2x128xi32>
    %cst_15 = arith.constant dense<2147483647> : vector<2xi32>
    %47 = vector.multi_reduction <minsi>, %46, %cst_15 [1] : vector<2x128xi32> to vector<2xi32>
    %48 = vector.shape_cast %47 : vector<2xi32> to vector<2x1xi32>
    %49 = vector.broadcast %48 : vector<2x1xi32> to vector<2x128xi32>
    %50 = arith.cmpi eq, %7, %49 : vector<2x128xi32>
    %51 = arith.extui %50 : vector<2x128xi1> to vector<2x128xi32>
    %52 = arith.addi %30, %51 : vector<2x128xi32>
    %c20_i32_16 = arith.constant 20 : i32
    %53 = vector.broadcast %c20_i32_16 : i32 to vector<2x128xi32>
    %54 = arith.cmpi sge, %7, %53 : vector<2x128xi32>
    %c30_i32 = arith.constant 30 : i32
    %55 = vector.broadcast %c30_i32 : i32 to vector<2x128xi32>
    %56 = arith.cmpi slt, %7, %55 : vector<2x128xi32>
    %57 = arith.andi %54, %56 : vector<2x128xi1>
    %cst_17 = arith.constant 0xFF800000 : f32
    %58 = vector.broadcast %cst_17 : f32 to vector<2x128xf32>
    %59 = arith.select %57, %6, %58 : vector<2x128xi1>, vector<2x128xf32>
    %cst_18 = arith.constant dense<0xFF800000> : vector<2xf32>
    %60 = vector.multi_reduction <maximumf>, %59, %cst_18 [1] : vector<2x128xf32> to vector<2xf32>
    %61 = vector.shape_cast %60 : vector<2xf32> to vector<2x1xf32>
    %62 = vector.broadcast %61 : vector<2x1xf32> to vector<2x128xf32>
    %63 = arith.cmpf oeq, %6, %62 : vector<2x128xf32>
    %64 = arith.andi %57, %63 : vector<2x128xi1>
    %c20_i32_19 = arith.constant 20 : i32
    %65 = vector.broadcast %c20_i32_19 : i32 to vector<2x128xi32>
    %66 = arith.subi %7, %65 : vector<2x128xi32>
    %c128_i32_20 = arith.constant 128 : i32
    %67 = vector.broadcast %c128_i32_20 : i32 to vector<2x128xi32>
    %68 = arith.select %64, %66, %67 : vector<2x128xi1>, vector<2x128xi32>
    %cst_21 = arith.constant dense<2147483647> : vector<2xi32>
    %69 = vector.multi_reduction <minsi>, %68, %cst_21 [1] : vector<2x128xi32> to vector<2xi32>
    %70 = vector.shape_cast %69 : vector<2xi32> to vector<2x1xi32>
    %71 = vector.broadcast %70 : vector<2x1xi32> to vector<2x128xi32>
    %72 = arith.cmpi eq, %7, %71 : vector<2x128xi32>
    %73 = arith.extui %72 : vector<2x128xi1> to vector<2x128xi32>
    %74 = arith.addi %52, %73 : vector<2x128xi32>
    %cst_22 = arith.constant dense<-2147483648> : vector<2xi32>
    %75 = vector.multi_reduction <maxsi>, %74, %cst_22 [1] : vector<2x128xi32> to vector<2xi32>
    %76 = vector.shape_cast %75 : vector<2xi32> to vector<2x1xi32>
    %77 = vector.broadcast %76 : vector<2x1xi32> to vector<2x128xi32>
    %78 = arith.cmpi eq, %74, %77 : vector<2x128xi32>
    %c10_i32_23 = arith.constant 10 : i32
    %79 = vector.broadcast %c10_i32_23 : i32 to vector<2x128xi32>
    %80 = arith.cmpi slt, %7, %79 : vector<2x128xi32>
    %81 = arith.andi %78, %80 : vector<2x128xi1>
    %c128_i32_24 = arith.constant 128 : i32
    %82 = vector.broadcast %c128_i32_24 : i32 to vector<2x128xi32>
    %83 = arith.select %81, %7, %82 : vector<2x128xi1>, vector<2x128xi32>
    %cst_25 = arith.constant dense<2147483647> : vector<2xi32>
    %84 = vector.multi_reduction <minsi>, %83, %cst_25 [1] : vector<2x128xi32> to vector<2xi32>
    %85 = vector.shape_cast %84 : vector<2xi32> to vector<2x1xi32>
    %86 = vector.shape_cast %85 : vector<2x1xi32> to vector<2x1xi32>
    %87 = vector.broadcast %86 : vector<2x1xi32> to vector<2x128xi32>
    %c0_26 = arith.constant 0 : index
    %c0_27 = arith.constant 0 : index
    %88 = vector.load %arg4[%c0_26, %c0_27] : memref<2x128xi32, #tpu.memory_space<vmem>>, vector<2x128xi32>
    tpu.vector_store %arg4[%c0_26, %c0_27], %87 {strides = array<i32>} : memref<2x128xi32, #tpu.memory_space<vmem>>, vector<2x128xi32>,
    return
  }
  func.func @transform_0(%arg0: i32) -> (i32, i32) {
    %c0_i32 = arith.constant 0 : i32
    %c0_i32_0 = arith.constant 0 : i32
    return %arg0, %c0_i32 : i32, i32
  }
  func.func @transform_1(%arg0: i32) -> (i32, i32) {
    %c0_i32 = arith.constant 0 : i32
    %c0_i32_0 = arith.constant 0 : i32
    %c0_i32_1 = arith.constant 0 : i32
    return %c0_i32, %c0_i32_0 : i32, i32
  }
  func.func @transform_2(%arg0: i32) -> (i32, i32) {
    %c0_i32 = arith.constant 0 : i32
    %c0_i32_0 = arith.constant 0 : i32
    %c0_i32_1 = arith.constant 0 : i32
    return %c0_i32, %c0_i32_0 : i32, i32
  }
  func.func @transform_3(%arg0: i32) -> (i32, i32) {
    %c0_i32 = arith.constant 0 : i32
    %c0_i32_0 = arith.constant 0 : i32
    return %arg0, %c0_i32 : i32, i32
  }
}

</mosaic_0001>

<llo_original>
// kernel: tpu_custom_call.1
$region0: #{tpu_custom_call.1}
  #allocation0 [shape = 'u32[]', space=smem, size = 0x4, offset = 0x4, fixed_abs, tag = 'smem constant byte address 0x4 - core index']
  #allocation1 [shape = 'u32[72,128]{1,0:T(1,128)}', space=vmem, size = 0x9000, scoped, tag = 'internal scratch']
  %s0 = inlined_call_operand.hbm [shape: f32[2,1024], index: 0, kind: input, shape index: {}]
  %s1 = inlined_call_operand.hbm [shape: bf16[1024,128], index: 1, kind: input, shape index: {}]
  %s2 = inlined_call_operand.vmem [shape: f32[1,128], index: 2, kind: input, shape index: {}]
  %s3 = inlined_call_operand.hbm [shape: s32[2,128], index: 3, kind: output, shape index: {}]
  %s4 = sld [smem:[#allocation0]]
  $region30: #{tpu_custom_call.1} parent=0
    _
  %s6 = ssub.s32 1, %s4
  %s7 = scalar_select 0, %s6, %s4
  $region1: #{tpu_custom_call.1} parent=0
    #allocation2 [shape = 'u8[8192]{0}', space=vmem, size = 0x2000, scoped, tag = 'input window, operand 0, single buffered']
    #allocation3 [shape = 's32[1]{0}', space=sflag, size = 0x4, scoped, tag = 'scoped memory for tpu_custom_call.1']
    #allocation4 [shape = 's32[1]{0}', space=sflag, size = 0x4, scoped, tag = 'scoped memory for tpu_custom_call.1']
    #allocation5 [shape = 'u8[262144]{0}', space=vmem, size = 0x40000, scoped, tag = 'input window, operand 1, single buffered']
    #allocation6 [shape = 's32[1]{0}', space=sflag, size = 0x4, scoped, tag = 'scoped memory for tpu_custom_call.1']
    #allocation7 [shape = 'u8[1024]{0}', space=vmem, size = 0x400, scoped, tag = 'output window, operand 0, single buffered']
    %8 = vsyncpa [#allocation3], 0
    %9 = vsyncpa [#allocation6], 0
    %10 = vsyncpa [#allocation4], 0
    // Predicated region
    $region2: #{tpu_custom_call.1} parent=1 // pred_check
      _
    $region3: #{tpu_custom_call.1} parent=1 // pred_check_branch
      %12 = sbr.rel (0) target = $region5
    $region4: #{tpu_custom_call.1} parent=1 // pred_region
      %14 = vsyncadd [#allocation3], 0
      %s16 = sshll.u32 %s0, 4
      %s17 = int_to_ptr.hbm [resolvable:$true] %s16
      %s18 = sshll.u32 [#allocation2], 4
      %s19 = int_to_ptr.vmem [resolvable:$true] %s18
      %21 = dma.hbm_to_vmem [thread:$0]  %s17, 256, %s19, [#allocation3]
    $region5: #{tpu_custom_call.1} parent=1 // pred_fallthru
      _
    // Predicated region
    $region6: #{tpu_custom_call.1} parent=1 // pred_check
      _
    $region7: #{tpu_custom_call.1} parent=1 // pred_check_branch
      %23 = sbr.rel (0) target = $region9
    $region8: #{tpu_custom_call.1} parent=1 // pred_region
      %25 = vsyncadd [#allocation6], 0
      %s26 = sshll.u32 %s1, 4
      %s27 = int_to_ptr.hbm [resolvable:$true] %s26
      %s28 = sshll.u32 [#allocation5], 4
      %s29 = int_to_ptr.vmem [resolvable:$true] %s28
      %34 = dma.hbm_to_vmem [thread:$0]  %s27, 8192, %s29, [#allocation6], 64, 64, 4
    $region9: #{tpu_custom_call.1} parent=1 // pred_fallthru
      _
    // Predicated region
    $region10: #{tpu_custom_call.1} parent=1 // pred_check
      _
    $region11: #{tpu_custom_call.1} parent=1 // pred_check_branch
      %36 = sbr.rel (0) target = $region13
    $region12: #{tpu_custom_call.1} parent=1 // pred_region
      _
    $region13: #{tpu_custom_call.1} parent=1 // pred_fallthru
      _
    // Predicated region
    $region14: #{tpu_custom_call.1} parent=1 // pred_check
      _
    $region15: #{tpu_custom_call.1} parent=1 // pred_check_branch
      %38 = sbr.rel (0) target = $region17
    $region16: #{tpu_custom_call.1} parent=1 // pred_region
      %40 = dma.done [#allocation3], 256
    $region17: #{tpu_custom_call.1} parent=1 // pred_fallthru
      _
    // Predicated region
    $region18: #{tpu_custom_call.1} parent=1 // pred_check
      _
    $region19: #{tpu_custom_call.1} parent=1 // pred_check_branch
      %42 = sbr.rel (0) target = $region21
    $region20: #{tpu_custom_call.1} parent=1 // pred_region
      %44 = dma.done [#allocation6], 8192
    $region21: #{tpu_custom_call.1} parent=1 // pred_fallthru
      _
    %v45 = vld [vmem:[#allocation2] sm:$0xff]
    %v46 = vld [vmem:[#allocation2 + $0x8] sm:$0xff]
    %49 = vst [vmem:[#allocation1] ss:$4 sm:$0xff] %v45
    %s50 = scalar_lea.vmem [#allocation1], 32
    %51 = vst [vmem:[%s50] ss:$4 sm:$0xff] %v46
    %v52 = vld.sshfl [vmem:[#allocation1] sm:$0xff pattern:$0x73625140]
    %v53 = vld.sshfl [vmem:[#allocation1 + $0x8] sm:$0xff pattern:$0x73625140]
    %v54 = vld.sshfl [vmem:[#allocation1 + $0x10] sm:$0xff pattern:$0x73625140]
    %v55 = vld.sshfl [vmem:[#allocation1 + $0x18] sm:$0xff pattern:$0x73625140]
    %v56 = vld.sshfl [vmem:[#allocation1 + $0x20] sm:$0xff pattern:$0x73625140]
    %v57 = vld.sshfl [vmem:[#allocation1 + $0x28] sm:$0xff pattern:$0x73625140]
    %v58 = vld.sshfl [vmem:[#allocation1 + $0x30] sm:$0xff pattern:$0x73625140]
    %v59 = vld.sshfl [vmem:[#allocation1 + $0x38] sm:$0xff pattern:$0x73625140]
    %v68 = vpack.c.bf16 %v52, %v52
    %v69 = vpack.c.bf16 %v53, %v53
    %v70 = vpack.c.bf16 %v54, %v54
    %v71 = vpack.c.bf16 %v55, %v55
    %v72 = vpack.c.bf16 %v56, %v56
    %v73 = vpack.c.bf16 %v57, %v57
    %v74 = vpack.c.bf16 %v58, %v58
    %v75 = vpack.c.bf16 %v59, %v59
    %v76 = vld [vmem:[#allocation5] sm:$0xf]
    %v77 = vld [vmem:[#allocation5 + $0x4] sm:$0xf]
    %v78 = vld [vmem:[#allocation5 + $0x8] sm:$0xf]
    %v79 = vld [vmem:[#allocation5 + $0xc] sm:$0xf]
    %v80 = vld [vmem:[#allocation5 + $0x10] sm:$0xf]
    %v81 = vld [vmem:[#allocation5 + $0x14] sm:$0xf]
    %v82 = vld [vmem:[#allocation5 + $0x18] sm:$0xf]
    %v83 = vld [vmem:[#allocation5 + $0x1c] sm:$0xf]
    %v84 = vld [vmem:[#allocation5 + $0x20] sm:$0xf]
    %v85 = vld [vmem:[#allocation5 + $0x24] sm:$0xf]
    %v86 = vld [vmem:[#allocation5 + $0x28] sm:$0xf]
    %v87 = vld [vmem:[#allocation5 + $0x2c] sm:$0xf]
    %v88 = vld [vmem:[#allocation5 + $0x30] sm:$0xf]
    %v89 = vld [vmem:[#allocation5 + $0x34] sm:$0xf]
    %v90 = vld [vmem:[#allocation5 + $0x38] sm:$0xf]
    %v91 = vld [vmem:[#allocation5 + $0x3c] sm:$0xf]
    %v92 = vld [vmem:[#allocation5 + $0x40] sm:$0xf]
    %v93 = vld [vmem:[#allocation5 + $0x44] sm:$0xf]
    %v94 = vld [vmem:[#allocation5 + $0x48] sm:$0xf]
    %v95 = vld [vmem:[#allocation5 + $0x4c] sm:$0xf]
    %v96 = vld [vmem:[#allocation5 + $0x50] sm:$0xf]
    %v97 = vld [vmem:[#allocation5 + $0x54] sm:$0xf]
    %v98 = vld [vmem:[#allocation5 + $0x58] sm:$0xf]
    %v99 = vld [vmem:[#allocation5 + $0x5c] sm:$0xf]
    %v100 = vld [vmem:[#allocation5 + $0x60] sm:$0xf]
    %v101 = vld [vmem:[#allocation5 + $0x64] sm:$0xf]
    %v102 = vld [vmem:[#allocation5 + $0x68] sm:$0xf]
    %v103 = vld [vmem:[#allocation5 + $0x6c] sm:$0xf]
    %v104 = vld [vmem:[#allocation5 + $0x70] sm:$0xf]
    %v105 = vld [vmem:[#allocation5 + $0x74] sm:$0xf]
    %v106 = vld [vmem:[#allocation5 + $0x78] sm:$0xf]
    %v107 = vld [vmem:[#allocation5 + $0x7c] sm:$0xf]
    %v108 = vld [vmem:[#allocation5 + $0x80] sm:$0xf]
    %v109 = vld [vmem:[#allocation5 + $0x84] sm:$0xf]
    %v110 = vld [vmem:[#allocation5 + $0x88] sm:$0xf]
    %v111 = vld [vmem:[#allocation5 + $0x8c] sm:$0xf]
    %v112 = vld [vmem:[#allocation5 + $0x90] sm:$0xf]
    %v113 = vld [vmem:[#allocation5 + $0x94] sm:$0xf]
    %v114 = vld [vmem:[#allocation5 + $0x98] sm:$0xf]
    %v115 = vld [vmem:[#allocation5 + $0x9c] sm:$0xf]
    %v116 = vld [vmem:[#allocation5 + $0xa0] sm:$0xf]
    %v117 = vld [vmem:[#allocation5 + $0xa4] sm:$0xf]
    %v118 = vld [vmem:[#allocation5 + $0xa8] sm:$0xf]
    %v119 = vld [vmem:[#allocation5 + $0xac] sm:$0xf]
    %v120 = vld [vmem:[#allocation5 + $0xb0] sm:$0xf]
    %v121 = vld [vmem:[#allocation5 + $0xb4] sm:$0xf]
    %v122 = vld [vmem:[#allocation5 + $0xb8] sm:$0xf]
    %v123 = vld [vmem:[#allocation5 + $0xbc] sm:$0xf]
    %v124 = vld [vmem:[#allocation5 + $0xc0] sm:$0xf]
    %v125 = vld [vmem:[#allocation5 + $0xc4] sm:$0xf]
    %v126 = vld [vmem:[#allocation5 + $0xc8] sm:$0xf]
    %v127 = vld [vmem:[#allocation5 + $0xcc] sm:$0xf]
    %v128 = vld [vmem:[#allocation5 + $0xd0] sm:$0xf]
    %v129 = vld [vmem:[#allocation5 + $0xd4] sm:$0xf]
    %v130 = vld [vmem:[#allocation5 + $0xd8] sm:$0xf]
    %v131 = vld [vmem:[#allocation5 + $0xdc] sm:$0xf]
    %v132 = vld [vmem:[#allocation5 + $0xe0] sm:$0xf]
    %v133 = vld [vmem:[#allocation5 + $0xe4] sm:$0xf]
    %v134 = vld [vmem:[#allocation5 + $0xe8] sm:$0xf]
    %v135 = vld [vmem:[#allocation5 + $0xec] sm:$0xf]
    %v136 = vld [vmem:[#allocation5 + $0xf0] sm:$0xf]
    %v137 = vld [vmem:[#allocation5 + $0xf4] sm:$0xf]
    %v138 = vld [vmem:[#allocation5 + $0xf8] sm:$0xf]
    %v139 = vld [vmem:[#allocation5 + $0xfc] sm:$0xf]
    %v140 = vld [vmem:[#allocation5 + $0x100] sm:$0xf]
    %v141 = vld [vmem:[#allocation5 + $0x104] sm:$0xf]
    %v142 = vld [vmem:[#allocation5 + $0x108] sm:$0xf]
    %v143 = vld [vmem:[#allocation5 + $0x10c] sm:$0xf]
    %v144 = vld [vmem:[#allocation5 + $0x110] sm:$0xf]
    %v145 = vld [vmem:[#allocation5 + $0x114] sm:$0xf]
    %v146 = vld [vmem:[#allocation5 + $0x118] sm:$0xf]
    %v147 = vld [vmem:[#allocation5 + $0x11c] sm:$0xf]
    %v148 = vld [vmem:[#allocation5 + $0x120] sm:$0xf]
    %v149 = vld [vmem:[#allocation5 + $0x124] sm:$0xf]
    %v150 = vld [vmem:[#allocation5 + $0x128] sm:$0xf]
    %v151 = vld [vmem:[#allocation5 + $0x12c] sm:$0xf]
    %v152 = vld [vmem:[#allocation5 + $0x130] sm:$0xf]
    %v153 = vld [vmem:[#allocation5 + $0x134] sm:$0xf]
    %v154 = vld [vmem:[#allocation5 + $0x138] sm:$0xf]
    %v155 = vld [vmem:[#allocation5 + $0x13c] sm:$0xf]
    %v156 = vld [vmem:[#allocation5 + $0x140] sm:$0xf]
    %v157 = vld [vmem:[#allocation5 + $0x144] sm:$0xf]
    %v158 = vld [vmem:[#allocation5 + $0x148] sm:$0xf]
    %v159 = vld [vmem:[#allocation5 + $0x14c] sm:$0xf]
    %v160 = vld [vmem:[#allocation5 + $0x150] sm:$0xf]
    %v161 = vld [vmem:[#allocation5 + $0x154] sm:$0xf]
    %v162 = vld [vmem:[#allocation5 + $0x158] sm:$0xf]
    %v163 = vld [vmem:[#allocation5 + $0x15c] sm:$0xf]
    %v164 = vld [vmem:[#allocation5 + $0x160] sm:$0xf]
    %v165 = vld [vmem:[#allocation5 + $0x164] sm:$0xf]
    %v166 = vld [vmem:[#allocation5 + $0x168] sm:$0xf]
    %v167 = vld [vmem:[#allocation5 + $0x16c] sm:$0xf]
    %v168 = vld [vmem:[#allocation5 + $0x170] sm:$0xf]
    %v169 = vld [vmem:[#allocation5 + $0x174] sm:$0xf]
    %v170 = vld [vmem:[#allocation5 + $0x178] sm:$0xf]
    %v171 = vld [vmem:[#allocation5 + $0x17c] sm:$0xf]
    %v172 = vld [vmem:[#allocation5 + $0x180] sm:$0xf]
    %v173 = vld [vmem:[#allocation5 + $0x184] sm:$0xf]
    %v174 = vld [vmem:[#allocation5 + $0x188] sm:$0xf]
    %v175 = vld [vmem:[#allocation5 + $0x18c] sm:$0xf]
    %v176 = vld [vmem:[#allocation5 + $0x190] sm:$0xf]
    %v177 = vld [vmem:[#allocation5 + $0x194] sm:$0xf]
    %v178 = vld [vmem:[#allocation5 + $0x198] sm:$0xf]
    %v179 = vld [vmem:[#allocation5 + $0x19c] sm:$0xf]
    %v180 = vld [vmem:[#allocation5 + $0x1a0] sm:$0xf]
    %v181 = vld [vmem:[#allocation5 + $0x1a4] sm:$0xf]
    %v182 = vld [vmem:[#allocation5 + $0x1a8] sm:$0xf]
    %v183 = vld [vmem:[#allocation5 + $0x1ac] sm:$0xf]
    %v184 = vld [vmem:[#allocation5 + $0x1b0] sm:$0xf]
    %v185 = vld [vmem:[#allocation5 + $0x1b4] sm:$0xf]
    %v186 = vld [vmem:[#allocation5 + $0x1b8] sm:$0xf]
    %v187 = vld [vmem:[#allocation5 + $0x1bc] sm:$0xf]
    %v188 = vld [vmem:[#allocation5 + $0x1c0] sm:$0xf]
    %v189 = vld [vmem:[#allocation5 + $0x1c4] sm:$0xf]
    %v190 = vld [vmem:[#allocation5 + $0x1c8] sm:$0xf]
    %v191 = vld [vmem:[#allocation5 + $0x1cc] sm:$0xf]
    %v192 = vld [vmem:[#allocation5 + $0x1d0] sm:$0xf]
    %v193 = vld [vmem:[#allocation5 + $0x1d4] sm:$0xf]
    %v194 = vld [vmem:[#allocation5 + $0x1d8] sm:$0xf]
    %v195 = vld [vmem:[#allocation5 + $0x1dc] sm:$0xf]
    %v196 = vld [vmem:[#allocation5 + $0x1e0] sm:$0xf]
    %v197 = vld [vmem:[#allocation5 + $0x1e4] sm:$0xf]
    %v198 = vld [vmem:[#allocation5 + $0x1e8] sm:$0xf]
    %v199 = vld [vmem:[#allocation5 + $0x1ec] sm:$0xf]
    %v200 = vld [vmem:[#allocation5 + $0x1f0] sm:$0xf]
    %v201 = vld [vmem:[#allocation5 + $0x1f4] sm:$0xf]
    %v202 = vld [vmem:[#allocation5 + $0x1f8] sm:$0xf]
    %v203 = vld [vmem:[#allocation5 + $0x1fc] sm:$0xf]
    %v204 = vld [vmem:[%s2] sm:$0x1]
    %v206 = vperm.slane %v204, 0
    %v336 = vunpack.c.l.b16 %v76
    %v337 = vunpack.c.l.b16 %v77
    %v338 = vunpack.c.l.b16 %v78
    %v339 = vunpack.c.l.b16 %v79
    %v340 = vunpack.c.l.b16 %v80
    %v341 = vunpack.c.l.b16 %v81
    %v342 = vunpack.c.l.b16 %v82
    %v343 = vunpack.c.l.b16 %v83
    %v344 = vunpack.c.l.b16 %v84
    %v345 = vunpack.c.l.b16 %v85
    %v346 = vunpack.c.l.b16 %v86
    %v347 = vunpack.c.l.b16 %v87
    %v348 = vunpack.c.l.b16 %v88
    %v349 = vunpack.c.l.b16 %v89
    %v350 = vunpack.c.l.b16 %v90
    %v351 = vunpack.c.l.b16 %v91
    %v352 = vunpack.c.l.b16 %v92
    %v353 = vunpack.c.l.b16 %v93
    %v354 = vunpack.c.l.b16 %v94
    %v355 = vunpack.c.l.b16 %v95
    %v356 = vunpack.c.l.b16 %v96
    %v357 = vunpack.c.l.b16 %v97
    %v358 = vunpack.c.l.b16 %v98
    %v359 = vunpack.c.l.b16 %v99
    %v360 = vunpack.c.l.b16 %v100
    %v361 = vunpack.c.l.b16 %v101
    %v362 = vunpack.c.l.b16 %v102
    %v363 = vunpack.c.l.b16 %v103
    %v364 = vunpack.c.l.b16 %v104
    %v365 = vunpack.c.l.b16 %v105
    %v366 = vunpack.c.l.b16 %v106
    %v367 = vunpack.c.l.b16 %v107
    %v368 = vunpack.c.l.b16 %v108
    %v369 = vunpack.c.l.b16 %v109
    %v370 = vunpack.c.l.b16 %v110
    %v371 = vunpack.c.l.b16 %v111
    %v372 = vunpack.c.l.b16 %v112
    %v373 = vunpack.c.l.b16 %v113
    %v374 = vunpack.c.l.b16 %v114
    %v375 = vunpack.c.l.b16 %v115
    %v376 = vunpack.c.l.b16 %v116
    %v377 = vunpack.c.l.b16 %v117
    %v378 = vunpack.c.l.b16 %v118
    %v379 = vunpack.c.l.b16 %v119
    %v380 = vunpack.c.l.b16 %v120
    %v381 = vunpack.c.l.b16 %v121
    %v382 = vunpack.c.l.b16 %v122
    %v383 = vunpack.c.l.b16 %v123
    %v384 = vunpack.c.l.b16 %v124
    %v385 = vunpack.c.l.b16 %v125
    %v386 = vunpack.c.l.b16 %v126
    %v387 = vunpack.c.l.b16 %v127
    %v388 = vunpack.c.l.b16 %v128
    %v389 = vunpack.c.l.b16 %v129
    %v390 = vunpack.c.l.b16 %v130
    %v391 = vunpack.c.l.b16 %v131
    %v392 = vunpack.c.l.b16 %v132
    %v393 = vunpack.c.l.b16 %v133
    %v394 = vunpack.c.l.b16 %v134
    %v395 = vunpack.c.l.b16 %v135
    %v396 = vunpack.c.l.b16 %v136
    %v397 = vunpack.c.l.b16 %v137
    %v398 = vunpack.c.l.b16 %v138
    %v399 = vunpack.c.l.b16 %v139
    %v400 = vunpack.c.l.b16 %v140
    %v401 = vunpack.c.l.b16 %v141
    %v402 = vunpack.c.l.b16 %v142
    %v403 = vunpack.c.l.b16 %v143
    %v404 = vunpack.c.l.b16 %v144
    %v405 = vunpack.c.l.b16 %v145
    %v406 = vunpack.c.l.b16 %v146
    %v407 = vunpack.c.l.b16 %v147
    %v408 = vunpack.c.l.b16 %v148
    %v409 = vunpack.c.l.b16 %v149
    %v410 = vunpack.c.l.b16 %v150
    %v411 = vunpack.c.l.b16 %v151
    %v412 = vunpack.c.l.b16 %v152
    %v413 = vunpack.c.l.b16 %v153
    %v414 = vunpack.c.l.b16 %v154
    %v415 = vunpack.c.l.b16 %v155
    %v416 = vunpack.c.l.b16 %v156
    %v417 = vunpack.c.l.b16 %v157
    %v418 = vunpack.c.l.b16 %v158
    %v419 = vunpack.c.l.b16 %v159
    %v420 = vunpack.c.l.b16 %v160
    %v421 = vunpack.c.l.b16 %v161
    %v422 = vunpack.c.l.b16 %v162
    %v423 = vunpack.c.l.b16 %v163
    %v424 = vunpack.c.l.b16 %v164
    %v425 = vunpack.c.l.b16 %v165
    %v426 = vunpack.c.l.b16 %v166
    %v427 = vunpack.c.l.b16 %v167
    %v428 = vunpack.c.l.b16 %v168
    %v429 = vunpack.c.l.b16 %v169
    %v430 = vunpack.c.l.b16 %v170
    %v431 = vunpack.c.l.b16 %v171
    %v432 = vunpack.c.l.b16 %v172
    %v433 = vunpack.c.l.b16 %v173
    %v434 = vunpack.c.l.b16 %v174
    %v435 = vunpack.c.l.b16 %v175
    %v436 = vunpack.c.l.b16 %v176
    %v437 = vunpack.c.l.b16 %v177
    %v438 = vunpack.c.l.b16 %v178
    %v439 = vunpack.c.l.b16 %v179
    %v440 = vunpack.c.l.b16 %v180
    %v441 = vunpack.c.l.b16 %v181
    %v442 = vunpack.c.l.b16 %v182
    %v443 = vunpack.c.l.b16 %v183
    %v444 = vunpack.c.l.b16 %v184
    %v445 = vunpack.c.l.b16 %v185
    %v446 = vunpack.c.l.b16 %v186
    %v447 = vunpack.c.l.b16 %v187
    %v448 = vunpack.c.l.b16 %v188
    %v449 = vunpack.c.l.b16 %v189
    %v450 = vunpack.c.l.b16 %v190
    %v451 = vunpack.c.l.b16 %v191
    %v452 = vunpack.c.l.b16 %v192
    %v453 = vunpack.c.l.b16 %v193
    %v454 = vunpack.c.l.b16 %v194
    %v455 = vunpack.c.l.b16 %v195
    %v456 = vunpack.c.l.b16 %v196
    %v457 = vunpack.c.l.b16 %v197
    %v458 = vunpack.c.l.b16 %v198
    %v459 = vunpack.c.l.b16 %v199
    %v460 = vunpack.c.l.b16 %v200
    %v461 = vunpack.c.l.b16 %v201
    %v462 = vunpack.c.l.b16 %v202
    %v463 = vunpack.c.l.b16 %v203
    %v464 = vpack.c.b16 %v337, %v336
    %v465 = vpack.c.b16 %v339, %v338
    %v466 = vpack.c.b16 %v341, %v340
    %v467 = vpack.c.b16 %v343, %v342
    %v468 = vpack.c.b16 %v345, %v344
    %v469 = vpack.c.b16 %v347, %v346
    %v470 = vpack.c.b16 %v349, %v348
    %v471 = vpack.c.b16 %v351, %v350
    %v472 = vpack.c.b16 %v353, %v352
    %v473 = vpack.c.b16 %v355, %v354
    %v474 = vpack.c.b16 %v357, %v356
    %v475 = vpack.c.b16 %v359, %v358
    %v476 = vpack.c.b16 %v361, %v360
    %v477 = vpack.c.b16 %v363, %v362
    %v478 = vpack.c.b16 %v365, %v364
    %v479 = vpack.c.b16 %v367, %v366
    %v480 = vpack.c.b16 %v369, %v368
    %v481 = vpack.c.b16 %v371, %v370
    %v482 = vpack.c.b16 %v373, %v372
    %v483 = vpack.c.b16 %v375, %v374
    %v484 = vpack.c.b16 %v377, %v376
    %v485 = vpack.c.b16 %v379, %v378
    %v486 = vpack.c.b16 %v381, %v380
    %v487 = vpack.c.b16 %v383, %v382
    %v488 = vpack.c.b16 %v385, %v384
    %v489 = vpack.c.b16 %v387, %v386
    %v490 = vpack.c.b16 %v389, %v388
    %v491 = vpack.c.b16 %v391, %v390
    %v492 = vpack.c.b16 %v393, %v392
    %v493 = vpack.c.b16 %v395, %v394
    %v494 = vpack.c.b16 %v397, %v396
    %v495 = vpack.c.b16 %v399, %v398
    %v496 = vpack.c.b16 %v401, %v400
    %v497 = vpack.c.b16 %v403, %v402
    %v498 = vpack.c.b16 %v405, %v404
    %v499 = vpack.c.b16 %v407, %v406
    %v500 = vpack.c.b16 %v409, %v408
    %v501 = vpack.c.b16 %v411, %v410
    %v502 = vpack.c.b16 %v413, %v412
    %v503 = vpack.c.b16 %v415, %v414
    %v504 = vpack.c.b16 %v417, %v416
    %v505 = vpack.c.b16 %v419, %v418
    %v506 = vpack.c.b16 %v421, %v420
    %v507 = vpack.c.b16 %v423, %v422
    %v508 = vpack.c.b16 %v425, %v424
    %v509 = vpack.c.b16 %v427, %v426
    %v510 = vpack.c.b16 %v429, %v428
    %v511 = vpack.c.b16 %v431, %v430
    %v512 = vpack.c.b16 %v433, %v432
    %v513 = vpack.c.b16 %v435, %v434
    %v514 = vpack.c.b16 %v437, %v436
    %v515 = vpack.c.b16 %v439, %v438
    %v516 = vpack.c.b16 %v441, %v440
    %v517 = vpack.c.b16 %v443, %v442
    %v518 = vpack.c.b16 %v445, %v444
    %v519 = vpack.c.b16 %v447, %v446
    %v520 = vpack.c.b16 %v449, %v448
    %v521 = vpack.c.b16 %v451, %v450
    %v522 = vpack.c.b16 %v453, %v452
    %v523 = vpack.c.b16 %v455, %v454
    %v524 = vpack.c.b16 %v457, %v456
    %v525 = vpack.c.b16 %v459, %v458
    %v526 = vpack.c.b16 %v461, %v460
    %v527 = vpack.c.b16 %v463, %v462
    %592 = vmatpush.bf16.msra.mxu0 %v471
    %593 = vmatpush.bf16.msra.mxu0 %v470
    %594 = vmatpush.bf16.msra.mxu0 %v469
    %595 = vmatpush.bf16.msra.mxu0 %v468
    %596 = vmatpush.bf16.msra.mxu0 %v467
    %597 = vmatpush.bf16.msra.mxu0 %v466
    %598 = vmatpush.bf16.msra.mxu0 %v465
    %599 = vmatpush.bf16.msra.mxu0 %v464
    %600 = vmatmul.bf16.gmra.mxu0 %v68
    %v601 = vpop.f32.mrf.mxu0
    %v602 = vadd.f32 %v206, %v601
    %v603 = vpop.f32.mrf.mxu0
    %604 = vdwg.mxu0
    %605 = vmatpush.bf16.msra.mxu0 %v479
    %606 = vmatpush.bf16.msra.mxu0 %v478
    %607 = vmatpush.bf16.msra.mxu0 %v477
    %608 = vmatpush.bf16.msra.mxu0 %v476
    %609 = vmatpush.bf16.msra.mxu0 %v475
    %610 = vmatpush.bf16.msra.mxu0 %v474
    %611 = vmatpush.bf16.msra.mxu0 %v473
    %612 = vmatpush.bf16.msra.mxu0 %v472
    %613 = vmatmul.bf16.gmra.mxu0 %v69
    %v614 = vpop.f32.mrf.mxu0
    %v615 = vadd.f32 %v602, %v614
    %v616 = vpop.f32.mrf.mxu0
    %617 = vdwg.mxu0
    %618 = vmatpush.bf16.msra.mxu0 %v487
    %619 = vmatpush.bf16.msra.mxu0 %v486
    %620 = vmatpush.bf16.msra.mxu0 %v485
    %621 = vmatpush.bf16.msra.mxu0 %v484
    %622 = vmatpush.bf16.msra.mxu0 %v483
    %623 = vmatpush.bf16.msra.mxu0 %v482
    %624 = vmatpush.bf16.msra.mxu0 %v481
    %625 = vmatpush.bf16.msra.mxu0 %v480
    %626 = vmatmul.bf16.gmra.mxu0 %v70
    %v627 = vpop.f32.mrf.mxu0
    %v628 = vadd.f32 %v615, %v627
    %v629 = vpop.f32.mrf.mxu0
    %630 = vdwg.mxu0
    %631 = vmatpush.bf16.msra.mxu0 %v495
    %632 = vmatpush.bf16.msra.mxu0 %v494
    %633 = vmatpush.bf16.msra.mxu0 %v493
    %634 = vmatpush.bf16.msra.mxu0 %v492
    %635 = vmatpush.bf16.msra.mxu0 %v491
    %636 = vmatpush.bf16.msra.mxu0 %v490
    %637 = vmatpush.bf16.msra.mxu0 %v489
    %638 = vmatpush.bf16.msra.mxu0 %v488
    %639 = vmatmul.bf16.gmra.mxu0 %v71
    %v640 = vpop.f32.mrf.mxu0
    %v641 = vadd.f32 %v628, %v640
    %v642 = vpop.f32.mrf.mxu0
    %643 = vdwg.mxu0
    %644 = vmatpush.bf16.msra.mxu0 %v503
    %645 = vmatpush.bf16.msra.mxu0 %v502
    %646 = vmatpush.bf16.msra.mxu0 %v501
    %647 = vmatpush.bf16.msra.mxu0 %v500
    %648 = vmatpush.bf16.msra.mxu0 %v499
    %649 = vmatpush.bf16.msra.mxu0 %v498
    %650 = vmatpush.bf16.msra.mxu0 %v497
    %651 = vmatpush.bf16.msra.mxu0 %v496
    %652 = vmatmul.bf16.gmra.mxu0 %v72
    %v653 = vpop.f32.mrf.mxu0
    %v654 = vadd.f32 %v641, %v653
    %v655 = vpop.f32.mrf.mxu0
    %656 = vdwg.mxu0
    %657 = vmatpush.bf16.msra.mxu0 %v511
    %658 = vmatpush.bf16.msra.mxu0 %v510
    %659 = vmatpush.bf16.msra.mxu0 %v509
    %660 = vmatpush.bf16.msra.mxu0 %v508
    %661 = vmatpush.bf16.msra.mxu0 %v507
    %662 = vmatpush.bf16.msra.mxu0 %v506
    %663 = vmatpush.bf16.msra.mxu0 %v505
    %664 = vmatpush.bf16.msra.mxu0 %v504
    %665 = vmatmul.bf16.gmra.mxu0 %v73
    %v666 = vpop.f32.mrf.mxu0
    %v667 = vadd.f32 %v654, %v666
    %v668 = vpop.f32.mrf.mxu0
    %669 = vdwg.mxu0
    %670 = vmatpush.bf16.msra.mxu0 %v519
    %671 = vmatpush.bf16.msra.mxu0 %v518
    %672 = vmatpush.bf16.msra.mxu0 %v517
    %673 = vmatpush.bf16.msra.mxu0 %v516
    %674 = vmatpush.bf16.msra.mxu0 %v515
    %675 = vmatpush.bf16.msra.mxu0 %v514
    %676 = vmatpush.bf16.msra.mxu0 %v513
    %677 = vmatpush.bf16.msra.mxu0 %v512
    %678 = vmatmul.bf16.gmra.mxu0 %v74
    %v679 = vpop.f32.mrf.mxu0
    %v680 = vadd.f32 %v667, %v679
    %v681 = vpop.f32.mrf.mxu0
    %682 = vdwg.mxu0
    %683 = vmatpush.bf16.msra.mxu0 %v527
    %684 = vmatpush.bf16.msra.mxu0 %v526
    %685 = vmatpush.bf16.msra.mxu0 %v525
    %686 = vmatpush.bf16.msra.mxu0 %v524
    %687 = vmatpush.bf16.msra.mxu0 %v523
    %688 = vmatpush.bf16.msra.mxu0 %v522
    %689 = vmatpush.bf16.msra.mxu0 %v521
    %690 = vmatpush.bf16.msra.mxu0 %v520
    %691 = vmatmul.bf16.gmra.mxu0 %v75
    %v692 = vpop.f32.mrf.mxu0
    %v693 = vadd.f32 %v680, %v692
    %v694 = vpop.f32.mrf.mxu0
    %695 = vdwg.mxu0
    %v696 = vlaneseq
    %v697 = vand.u32 %v696, 127
    %vm698 = vcmp.ge.s32.totalorder %v697, 0
    %vm699 = vcmp.lt.s32.totalorder %v697, 10
    %vm700 = vmand %vm698, %vm699
    %v701 = vsel %vm700, %v693, -inf
    %vm702 = vcmask 1041408
    %v703 = vsel %vm702, %v701, -inf
    %704 = vmax.xlane.f32.xlu0 %v703
    %v705 = vpop.xlane.xlu0 %704
    %vm706 = vcmp.eq.f32.partialorder %v693, %v705
    %vm707 = vmand %vm700, %vm706
    %v708 = vsel %vm707, %v697, 128
    %v709 = vsel %vm702, %v708, 2147483647
    %v710 = vand.u32 %v709, 65535
    %v711 = vshra.s32 %v709, 16
    %v712 = vcvt.s32.f32 %v710
    %v713 = vcvt.s32.f32 %v711
    %714 = vmin.xlane.f32.xlu0 %v713
    %v715 = vpop.xlane.xlu0 %714
    %vm716 = vcmp.eq.f32.partialorder %v713, %v715
    %v717 = vsel %vm716, %v712, inf
    %718 = vmin.xlane.f32.xlu0 %v717
    %v719 = vpop.xlane.xlu0 %718
    %v720 = vcvt.f32.s32 %v719
    %v721 = vcvt.f32.s32 %v715
    %v722 = vshll.u32 %v721, 16
    %v723 = vadd.s32 %v722, %v720
    %vm724 = vcmp.eq.s32.totalorder %v697, %v723
    %v725 = vsel %vm724, 1, 0
    %vm726 = vcmp.ge.s32.totalorder %v697, 10
    %vm727 = vcmp.lt.s32.totalorder %v697, 20
    %vm728 = vmand %vm726, %vm727
    %v729 = vsel %vm728, %v693, -inf
    %v730 = vsel %vm702, %v729, -inf
    %731 = vmax.xlane.f32.xlu0 %v730
    %v732 = vpop.xlane.xlu0 %731
    %vm733 = vcmp.eq.f32.partialorder %v693, %v732
    %vm734 = vmand %vm728, %vm733
    %v735 = vsub.s32 %v697, 10
    %v736 = vsel %vm734, %v735, 128
    %v737 = vsel %vm702, %v736, 2147483647
    %v738 = vand.u32 %v737, 65535
    %v739 = vshra.s32 %v737, 16
    %v740 = vcvt.s32.f32 %v738
    %v741 = vcvt.s32.f32 %v739
    %742 = vmin.xlane.f32.xlu0 %v741
    %v743 = vpop.xlane.xlu0 %742
    %vm744 = vcmp.eq.f32.partialorder %v741, %v743
    %v745 = vsel %vm744, %v740, inf
    %746 = vmin.xlane.f32.xlu0 %v745
    %v747 = vpop.xlane.xlu0 %746
    %v748 = vcvt.f32.s32 %v747
    %v749 = vcvt.f32.s32 %v743
    %v750 = vshll.u32 %v749, 16
    %v751 = vadd.s32 %v750, %v748
    %vm752 = vcmp.eq.s32.totalorder %v697, %v751
    %v753 = vsel %vm752, 1, 0
    %v754 = vadd.s32 %v725, %v753
    %vm755 = vcmp.ge.s32.totalorder %v697, 20
    %vm756 = vcmp.lt.s32.totalorder %v697, 30
    %vm757 = vmand %vm755, %vm756
    %v758 = vsel %vm757, %v693, -inf
    %v759 = vsel %vm702, %v758, -inf
    %760 = vmax.xlane.f32.xlu0 %v759
    %v761 = vpop.xlane.xlu0 %760
    %vm762 = vcmp.eq.f32.partialorder %v693, %v761
    %vm763 = vmand %vm757, %vm762
    %v764 = vsub.s32 %v697, 20
    %v765 = vsel %vm763, %v764, 128
    %v766 = vsel %vm702, %v765, 2147483647
    %v767 = vand.u32 %v766, 65535
    %v768 = vshra.s32 %v766, 16
    %v769 = vcvt.s32.f32 %v767
    %v770 = vcvt.s32.f32 %v768
    %771 = vmin.xlane.f32.xlu0 %v770
    %v772 = vpop.xlane.xlu0 %771
    %vm773 = vcmp.eq.f32.partialorder %v770, %v772
    %v774 = vsel %vm773, %v769, inf
    %775 = vmin.xlane.f32.xlu0 %v774
    %v776 = vpop.xlane.xlu0 %775
    %v777 = vcvt.f32.s32 %v776
    %v778 = vcvt.f32.s32 %v772
    %v779 = vshll.u32 %v778, 16
    %v780 = vadd.s32 %v779, %v777
    %vm781 = vcmp.eq.s32.totalorder %v697, %v780
    %v782 = vsel %vm781, 1, 0
    %v783 = vadd.s32 %v754, %v782
    %v784 = vsel %vm702, %v783, 2147483648
    %v785 = vand.u32 %v784, 65535
    %v786 = vshra.s32 %v784, 16
    %v787 = vcvt.s32.f32 %v785
    %v788 = vcvt.s32.f32 %v786
    %789 = vmax.xlane.f32.xlu0 %v788
    %v790 = vpop.xlane.xlu0 %789
    %vm791 = vcmp.eq.f32.partialorder %v788, %v790
    %v792 = vsel %vm791, %v787, -inf
    %793 = vmax.xlane.f32.xlu0 %v792
    %v794 = vpop.xlane.xlu0 %793
    %v795 = vcvt.f32.s32 %v794
    %v796 = vcvt.f32.s32 %v790
    %v797 = vshll.u32 %v796, 16
    %v798 = vadd.s32 %v797, %v795
    %vm799 = vcmp.eq.s32.totalorder %v783, %v798
    %vm800 = vmand %vm799, %vm699
    %v801 = vsel %vm800, %v697, 128
    %v802 = vsel %vm702, %v801, 2147483647
    %v803 = vand.u32 %v802, 65535
    %v804 = vshra.s32 %v802, 16
    %v805 = vcvt.s32.f32 %v803
    %v806 = vcvt.s32.f32 %v804
    %807 = vmin.xlane.f32.xlu0 %v806
    %v808 = vpop.xlane.xlu0 %807
    %vm809 = vcmp.eq.f32.partialorder %v806, %v808
    %v810 = vsel %vm809, %v805, inf
    %811 = vmin.xlane.f32.xlu0 %v810
    %v812 = vpop.xlane.xlu0 %811
    %v813 = vcvt.f32.s32 %v812
    %v814 = vcvt.f32.s32 %v808
    %v815 = vshll.u32 %v814, 16
    %v816 = vadd.s32 %v815, %v813
    %817 = vst [vmem:[#allocation7] sm:$0x3] %v816
    // Predicated region
    $region22: #{tpu_custom_call.1} parent=1 // pred_check
      _
    $region23: #{tpu_custom_call.1} parent=1 // pred_check_branch
      %819 = sbr.rel (0) target = $region25
    $region24: #{tpu_custom_call.1} parent=1 // pred_region
      %821 = vsyncadd [#allocation4], 0
      %s823 = sshll.u32 [#allocation7], 4
      %s824 = int_to_ptr.vmem [resolvable:$true] %s823
      %s825 = sshll.u32 %s3, 4
      %s826 = int_to_ptr.hbm [resolvable:$true] %s825
      %828 = dma.vmem_to_hbm [thread:$0]  %s824, 32, %s826, [#allocation4]
    $region25: #{tpu_custom_call.1} parent=1 // pred_fallthru
      _
    // Predicated region
    $region26: #{tpu_custom_call.1} parent=1 // pred_check
      _
    $region27: #{tpu_custom_call.1} parent=1 // pred_check_branch
      %830 = sbr.rel (0) target = $region29
    $region28: #{tpu_custom_call.1} parent=1 // pred_region
      %832 = dma.done [#allocation4], 32
    $region29: #{tpu_custom_call.1} parent=1 // pred_fallthru
      _
    %833 = vsyncpa [#allocation3], 1
    %834 = vsyncpa [#allocation6], 1
    %835 = vsyncpa [#allocation4], 1

</llo_original>
